<compile_context>
chip_gen: v7x
topology: tpu7x:2x2x1
jax: 0.10.0
libtpu: 0.0.40
codegen_flags: <defaults>
</compile_context>

<pallas_src>
import jax
import jax.numpy as jnp
from jax.experimental import pallas as pl
from jax.experimental.pallas import tpu as pltpu

_MB = 1024 * 1024


# ----------------------------- kernel -----------------------------------------

def _maxpool_kernel(x_ref, o_ref):
    """x_ref: (tb, C, tp) input tile; o_ref: (tb, C) resident output/accumulator.

    Grid = (batch_blocks, points_blocks).  The output BlockSpec returns the same
    block for every points-block, so o_ref stays resident in VMEM across the
    reduction axis and acts as the running-max accumulator.
    """
    k = pl.program_id(1)
    tile_max = jnp.max(x_ref[...], axis=-1)           # XLU reduce -> (tb, C)

    @pl.when(k == 0)
    def _():
        o_ref[...] = tile_max

    @pl.when(k > 0)
    def _():
        o_ref[...] = jnp.maximum(o_ref[...], tile_max)


# ----------------------------- wrapper -----------------------------------------

def _pick_points_tile(num_channels, num_points, max_tile_bytes, itemsize):
    """Largest points-tile that (a) divides P (so padded lanes never pollute the
    max), (b) satisfies the (8,128) BlockSpec rule when partial, and (c) keeps
    one (C, tp) slab under max_tile_bytes."""
    full_bytes = num_channels * num_points * itemsize
    if full_bytes <= max_tile_bytes:
        return num_points
    if num_points % 128 == 0:
        tp = (max_tile_bytes // (num_channels * itemsize)) // 128 * 128
        tp = max(tp, 128)
        while num_points % tp != 0:          # keep divisibility
            tp -= 128
        return tp
    # TODO(synk): P too large for one VMEM slab and not 128-divisible would need
    # a masked (-inf padded) reduction; fall back to the full slab.
    return num_points


def maxpool_forward(input_data, num_channels, num_points, *,
                    batch_tile=None, points_tile=None):
    """Pallas equivalent of MaxPool(num_channels, num_points).forward()."""
    c, p = num_channels, num_points
    total = input_data.size
    assert total % (c * p) == 0, "input numel must be divisible by C * P"
    b = total // (c * p)
    # row-major reshape == torch .contiguous().view(-1, C, P)
    x = input_data.reshape(b, c, p)
    itemsize = jnp.dtype(x.dtype).itemsize

    # ---- points (reduction) tiling ----
    if points_tile is None:
        tp = _pick_points_tile(c, p, 8 * _MB, itemsize)
    else:
        assert p % points_tile == 0 and (points_tile == p or points_tile % 128 == 0)
        tp = points_tile
    nk = p // tp

    # ---- batch tiling (parallel axis) ----
    if batch_tile is None:
        batch_tile = max(1, (8 * _MB) // (c * tp * itemsize))
    tb = min(b, batch_tile)
    if tb < b and tb % 8 != 0:
        # output block's sublane dim must be a multiple of 8 unless it spans B
        tb = min(b, max(8, (tb // 8) * 8))
    nb = pl.cdiv(b, tb)   # partial last block is safe: per-row max, masked write

    vmem_bytes = 2 * tb * c * tp * itemsize + 2 * tb * c * itemsize + (1 << 20)
    vmem_bytes = min(max(vmem_bytes, 4 * _MB), 30 * _MB)

    return pl.pallas_call(
        _maxpool_kernel,
        out_shape=jax.ShapeDtypeStruct((b, c), x.dtype),
        grid=(nb, nk),
        in_specs=[pl.BlockSpec((tb, c, tp), lambda i, k: (i, 0, k))],
        out_specs=pl.BlockSpec((tb, c), lambda i, k: (i, 0)),
        compiler_params=pltpu.CompilerParams(
            dimension_semantics=("parallel", "arbitrary"),
            vmem_limit_bytes=vmem_bytes),
    )(x)


# ----------------------------- self-test ---------------------------------------

if __name__ == "__main__":
    key = jax.random.PRNGKey(0)
    k1, k2, k3 = jax.random.split(key, 3)

    # Case 1: small module-shaped input (B=2, C=8, P=16), given as (B, C, P).
    C1, P1 = 8, 16
    x1 = jax.random.normal(k1, (2, C1, P1), jnp.float32)
    y1 = jax.block_until_ready(maxpool_forward(x1, C1, P1))
    ref1 = jnp.max(x1.reshape(-1, C1, P1), axis=-1).reshape(-1, C1)
    assert y1.shape == (2, C1)
    assert bool(jnp.allclose(y1, ref1))

    # Case 2: flat input exercising the .view(-1, C, P) semantics (B=3).
    C2, P2 = 4, 32
    x2 = jax.random.normal(k2, (3, C2 * P2), jnp.float32)
    y2 = jax.block_until_ready(maxpool_forward(x2, C2, P2))
    ref2 = jnp.max(x2.reshape(-1, C2, P2), axis=-1).reshape(-1, C2)
    assert y2.shape == (3, C2)
    assert bool(jnp.allclose(y2, ref2))

    # Case 3: exercises the batch-parallel grid AND the points-axis reduction
    # (grid = (2, 4), resident running-max accumulator).
    C3, P3 = 128, 512
    x3 = jax.random.normal(k3, (16, C3, P3), jnp.float32)
    y3 = jax.block_until_ready(
        maxpool_forward(x3, C3, P3, batch_tile=8, points_tile=128))
    ref3 = jnp.max(x3, axis=-1)
    assert y3.shape == (16, C3)
    assert bool(jnp.allclose(y3, ref3))

    print("KERNEL_OK")
</pallas_src>

<mosaic_0001>
module attributes {stable_mosaic.version = 11 : i64} {
  func.func @_maxpool_kernel(%arg0: i32, %arg1: i32, %arg2: memref<2x8x16xf32, #tpu.memory_space<vmem>>, %arg3: memref<2x8xf32, #tpu.memory_space<vmem>>) attributes {dimension_semantics = [#tpu.dimension_semantics<parallel>, #tpu.dimension_semantics<arbitrary>], iteration_bounds = array<i64: 1, 1>, scalar_prefetch = 0 : i64, scratch_operands = 0 : i64, tpu.core_type = #tpu.core_type<tc>, window_params = [{transform_indices = @transform_0, window_bounds = array<i64: 2, 8, 16>}, {transform_indices = @transform_1, window_bounds = array<i64: 2, 8>}]} {
    %c0 = arith.constant 0 : index
    %c0_0 = arith.constant 0 : index
    %c0_1 = arith.constant 0 : index
    %0 = vector.load %arg2[%c0, %c0_0, %c0_1] : memref<2x8x16xf32, #tpu.memory_space<vmem>>, vector<2x8x16xf32>
    %cst = arith.constant dense<0xFF800000> : vector<2x8xf32>
    %1 = vector.multi_reduction <maximumf>, %0, %cst [2] : vector<2x8x16xf32> to vector<2x8xf32>
    %c0_i32 = arith.constant 0 : i32
    %2 = arith.cmpi eq, %arg1, %c0_i32 : i32
    %3 = arith.extui %2 : i1 to i32
    %c0_i32_2 = arith.constant 0 : i32
    %4 = arith.cmpi ne, %3, %c0_i32_2 : i32
    scf.if %4 {
      %c0_5 = arith.constant 0 : index
      %c0_6 = arith.constant 0 : index
      %8 = vector.load %arg3[%c0_5, %c0_6] : memref<2x8xf32, #tpu.memory_space<vmem>>, vector<2x8xf32>
      tpu.vector_store %arg3[%c0_5, %c0_6], %1 {strides = array<i32>} : memref<2x8xf32, #tpu.memory_space<vmem>>, vector<2x8xf32>,
    } else {
    }
    %c0_i32_3 = arith.constant 0 : i32
    %5 = arith.cmpi sgt, %arg1, %c0_i32_3 : i32
    %6 = arith.extui %5 : i1 to i32
    %c0_i32_4 = arith.constant 0 : i32
    %7 = arith.cmpi ne, %6, %c0_i32_4 : i32
    scf.if %7 {
      %c0_5 = arith.constant 0 : index
      %c0_6 = arith.constant 0 : index
      %8 = vector.load %arg3[%c0_5, %c0_6] : memref<2x8xf32, #tpu.memory_space<vmem>>, vector<2x8xf32>
      %9 = arith.maximumf %8, %1 : vector<2x8xf32>
      %c0_7 = arith.constant 0 : index
      %c0_8 = arith.constant 0 : index
      %10 = vector.load %arg3[%c0_7, %c0_8] : memref<2x8xf32, #tpu.memory_space<vmem>>, vector<2x8xf32>
      tpu.vector_store %arg3[%c0_7, %c0_8], %9 {strides = array<i32>} : memref<2x8xf32, #tpu.memory_space<vmem>>, vector<2x8xf32>,
    } else {
    }
    return
  }
  func.func @transform_0(%arg0: i32, %arg1: i32) -> (i32, i32, i32) {
    %c0_i32 = arith.constant 0 : i32
    %c0_i32_0 = arith.constant 0 : i32
    return %arg0, %c0_i32, %arg1 : i32, i32, i32
  }
  func.func @transform_1(%arg0: i32, %arg1: i32) -> (i32, i32) {
    %c0_i32 = arith.constant 0 : i32
    %c0_i32_0 = arith.constant 0 : i32
    return %arg0, %c0_i32 : i32, i32
  }
}

</mosaic_0001>

<llo_original>
// kernel: tpu_custom_call.1
$region0: #{tpu_custom_call.1}
  #allocation0 [shape = 'u32[]', space=smem, size = 0x4, offset = 0x4, fixed_abs, tag = 'smem constant byte address 0x4 - core index']
  #allocation1 [shape = 'u32[144,128]{1,0:T(1,128)}', space=vmem, size = 0x12000, scoped, tag = 'internal scratch']
  %s0 = inlined_call_operand.hbm [shape: f32[2,8,16], index: 0, kind: input, shape index: {}]
  %s1 = inlined_call_operand.hbm [shape: f32[2,8], index: 1, kind: output, shape index: {}]
  %s2 = sld [smem:[#allocation0]]
  $region26: #{tpu_custom_call.1} parent=0
    _
  %s4 = ssub.s32 1, %s2
  %s5 = scalar_select 0, %s4, %s2
  $region1: #{tpu_custom_call.1} parent=0
    #allocation2 [shape = 'u8[8192]{0}', space=vmem, size = 0x2000, scoped, tag = 'input window, operand 0, single buffered']
    #allocation3 [shape = 's32[1]{0}', space=sflag, size = 0x4, scoped, tag = 'scoped memory for tpu_custom_call.1']
    #allocation4 [shape = 's32[1]{0}', space=sflag, size = 0x4, scoped, tag = 'scoped memory for tpu_custom_call.1']
    #allocation5 [shape = 'u8[1024]{0}', space=vmem, size = 0x400, scoped, tag = 'output window, operand 0, single buffered']
    %6 = vsyncpa [#allocation3], 0
    %7 = vsyncpa [#allocation4], 0
    // Predicated region
    $region2: #{tpu_custom_call.1} parent=1 // pred_check
      _
    $region3: #{tpu_custom_call.1} parent=1 // pred_check_branch
      %9 = sbr.rel (0) target = $region5
    $region4: #{tpu_custom_call.1} parent=1 // pred_region
      %s11 = ssub.s32 256, 256
      %12 = vsyncadd [#allocation3], %s11
      %s13 = sshll.u32 [#allocation2], 4
      %s14 = int_to_ptr.vmem [resolvable:$true] %s13
      %19 = dma.hbm_to_vmem [thread:$0]  %s0, 256, %s14, [#allocation3], 128, 128, 8
    $region5: #{tpu_custom_call.1} parent=1 // pred_fallthru
      _
    // Predicated region
    $region6: #{tpu_custom_call.1} parent=1 // pred_check
      _
    $region7: #{tpu_custom_call.1} parent=1 // pred_check_branch
      %21 = sbr.rel (0) target = $region9
    $region8: #{tpu_custom_call.1} parent=1 // pred_region
      %22 = dma.done [#allocation3], 256
    $region9: #{tpu_custom_call.1} parent=1 // pred_fallthru
      _
    %v23 = vld [vmem:[#allocation2] sm:$0xff]
    %v24 = vld [vmem:[#allocation2 + $0x8] sm:$0xff]
    %vm25 = vcmask 130048
    %v26 = vsel %vm25, %v23, -inf
    %27 = vmax.xlane.f32.xlu0 %v26
    %v28 = vpop.xlane.xlu0 %27
    %v29 = vsel %vm25, %v24, -inf
    %30 = vmax.xlane.f32.xlu0 %v29
    %v31 = vpop.xlane.xlu0 %30
    %p32 = scmp.eq.s32.totalorder 0, 0
    // Predicated region
    $region10: #{tpu_custom_call.1} parent=1 // pred_check
      %p33 = pneg %p32
    $region11: #{tpu_custom_call.1} parent=1 // pred_check_branch
      %35 = sbr.rel (%p33) target = $region13
    $region12: #{tpu_custom_call.1} parent=1 // pred_region
      %v38 = vlaneseq
      %v39 = vand.u32 %v38, 127
      %v40 = vlaneseq
      %v41 = vshrl.u32 %v40, 7
      %v42 = vsub.s32 %v39, %v41
      %v43 = vrot.slane %v28, %v42
      %v44 = vlaneseq
      %v45 = vshrl.u32 %v44, 7
      %v46 = vsub.s32 %v39, %v45
      %v47 = vrot.slane %v31, %v46
      %vm48 = vcmask 1041409
      %v49 = vsel %vm48, %v47, %v43
      %vm51 = vcmask 58368
      %52 = vst.msk [vmem:[#allocation5] sm:$0x3] %vm51, %v49
    $region13: #{tpu_custom_call.1} parent=1 // pred_fallthru
      _
    %p53 = scmp.gt.s32.totalorder 0, 0
    // Predicated region
    $region14: #{tpu_custom_call.1} parent=1 // pred_check
      %p54 = pneg %p53
    $region15: #{tpu_custom_call.1} parent=1 // pred_check_branch
      %56 = sbr.rel (%p54) target = $region17
    $region16: #{tpu_custom_call.1} parent=1 // pred_region
      %v57 = vld [vmem:[#allocation5] sm:$0x3]
      %v60 = vlaneseq
      %v61 = vand.u32 %v60, 127
      %v62 = vlaneseq
      %v63 = vshrl.u32 %v62, 7
      %v64 = vsub.s32 %v61, %v63
      %v65 = vrot.slane %v28, %v64
      %v66 = vlaneseq
      %v67 = vshrl.u32 %v66, 7
      %v68 = vsub.s32 %v61, %v67
      %v69 = vrot.slane %v31, %v68
      %vm70 = vcmask 1041409
      %v71 = vsel %vm70, %v69, %v65
      %v73 = vmax.f32 %v57, %v71
      %vm74 = vcmask 58368
      %75 = vst.msk [vmem:[#allocation5] sm:$0x3] %vm74, %v73
    $region17: #{tpu_custom_call.1} parent=1 // pred_fallthru
      _
    // Predicated region
    $region18: #{tpu_custom_call.1} parent=1 // pred_check
      _
    $region19: #{tpu_custom_call.1} parent=1 // pred_check_branch
      %77 = sbr.rel (0) target = $region21
    $region20: #{tpu_custom_call.1} parent=1 // pred_region
      %s79 = ssub.s32 32, 32
      %80 = vsyncadd [#allocation4], %s79
      %s82 = sshll.u32 [#allocation5], 4
      %s83 = int_to_ptr.vmem [resolvable:$true] %s82
      %85 = dma.vmem_to_hbm [thread:$0]  %s83, 32, %s1, [#allocation4]
    $region21: #{tpu_custom_call.1} parent=1 // pred_fallthru
      _
    // Predicated region
    $region22: #{tpu_custom_call.1} parent=1 // pred_check
      _
    $region23: #{tpu_custom_call.1} parent=1 // pred_check_branch
      %87 = sbr.rel (0) target = $region25
    $region24: #{tpu_custom_call.1} parent=1 // pred_region
      %88 = dma.done [#allocation4], 32
    $region25: #{tpu_custom_call.1} parent=1 // pred_fallthru
      _
    %89 = vsyncpa [#allocation3], 1
    %90 = vsyncpa [#allocation4], 1

</llo_original>
